<compile_context>
chip_gen: v5e
topology: v5e:2x2
jax: 0.10.0
libtpu: 0.0.40
codegen_flags: <defaults>
</compile_context>

<pallas_src>
import functools

import jax
import jax.numpy as jnp
from jax import lax
from jax.experimental import pallas as pl
from jax.experimental.pallas import tpu as pltpu


def _two_tensorcores():
    """Best-effort detection of 2-TensorCore chips (v7x). Conservative default: False."""
    try:
        kind = jax.devices()[0].device_kind.lower()
    except Exception:
        return False
    return ("7x" in kind) or ("v7" in kind) or ("tpu7" in kind)


def _masked_mse_partial_kernel(x_ref, t_ref, m_ref, o_ref, *,
                               n_r_inner, valid_rows, valid_k,
                               need_row_mask, need_lane_mask, unroll):
    """Accumulate sum(((x - t) * m)^2) partials into the resident out block."""
    c = pl.program_id(0)          # chunk axis (core-parallel on 2-TC chips)
    j = pl.program_id(1)          # k-block axis (reduction)
    r = pl.program_id(2)          # row-block axis (reduction, innermost)

    row_tile, k_tile = x_ref.shape
    n_groups = row_tile // 8

    # Zero the per-chunk resident accumulator (= the output block) once.
    @pl.when(jnp.logical_and(j == 0, r == 0))
    def _():
        o_ref[...] = jnp.zeros_like(o_ref)

    # Hoist the mask broadcast out of the group loop (JAX doesn't CSE it).
    m8 = jnp.broadcast_to(m_ref[...].astype(jnp.float32), (8, k_tile))

    # First global row covered by this (possibly duplicated / partial) block.
    # NOTE: uses the UNclamped block index so duplicate blocks mask to zero.
    row0 = (c * n_r_inner + r) * row_tile

    def group_sq(g):
        i0 = pl.multiple_of(g * 8, 8)
        xg = x_ref[pl.ds(i0, 8), :].astype(jnp.float32)
        tg = t_ref[pl.ds(i0, 8), :].astype(jnp.float32)
        dg = (xg - tg) * m8                       # == x*m - t*m
        return dg * dg                            # (8, k_tile)

    def fast_body(g, part):                       # interior blocks: no masking
        return part + group_sq(g)

    def masked_body(g, part):                     # tail / duplicated blocks
        d2 = group_sq(g)
        ok = None
        if need_lane_mask:
            col = j * k_tile + lax.broadcasted_iota(jnp.int32, (1, k_tile), 1)
            ok = col < valid_k                    # (1, k_tile)
        if need_row_mask:
            rid = row0 + g * 8 + lax.broadcasted_iota(jnp.int32, (8, 1), 0)
            row_ok = rid < valid_rows             # (8, 1)
            ok = row_ok if ok is None else jnp.logical_and(row_ok, ok)
        return part + jnp.where(ok, d2, 0.0)      # select kills OOB garbage/NaN

    zeros = jnp.zeros((8, k_tile), jnp.float32)

    if not (need_row_mask or need_lane_mask):
        part = lax.fori_loop(0, n_groups, fast_body, zeros, unroll=unroll)
        o_ref[...] += part[None, :, :]
    else:
        # Pay the masking cost only on tail / duplicated blocks.
        conds = []
        if need_row_mask:
            conds.append(row0 + row_tile <= valid_rows)
        if need_lane_mask:
            conds.append(j < pl.num_programs(1) - 1)
        interior = conds[0]
        for cnd in conds[1:]:
            interior = jnp.logical_and(interior, cnd)

        @pl.when(interior)
        def _():
            part = lax.fori_loop(0, n_groups, fast_body, zeros, unroll=unroll)
            o_ref[...] += part[None, :, :]

        @pl.when(jnp.logical_not(interior))
        def _():
            part = lax.fori_loop(0, n_groups, masked_body, zeros, unroll=unroll)
            o_ref[...] += part[None, :, :]


def masked_loss_multiplicative(x, target, mask, *,
                               block_bytes=4 * 1024 * 1024,
                               k_tile_max=2048,
                               num_chunks=None):
    """Masked MSE loss (mean reduction), matching the PyTorch module.

    Args:
        x, target: arrays of shape [N, C, H, W] (any float dtype; streamed in
                   native dtype, accumulated in f32).
        mask:      array broadcastable to [H, W] (e.g. [H, W] or scalar).
        block_bytes: target HBM bytes per input block per grid step.
        k_tile_max:  lane-tile cap (multiple of 128).
        num_chunks:  None = auto (2 only on 2-TensorCore chips).

    Returns:
        Scalar float32 loss = mean((x*mask - target*mask)**2).
    """
    assert x.shape == target.shape and x.ndim == 4
    assert k_tile_max % 128 == 0
    n, ch, h, w = x.shape
    rows = n * ch
    k = h * w
    total = rows * k                              # divisor uses ORIGINAL count
    itemsize = int(jnp.dtype(x.dtype).itemsize)

    x2d = x.reshape(rows, k)
    t2d = target.reshape(rows, k)
    m2d = jnp.broadcast_to(mask, (h, w)).reshape(1, k).astype(jnp.float32)

    # Tiny-input corner case only: pad rows up to one sublane group.  Padded
    # rows are zeros in BOTH inputs so they contribute exactly 0 to the sum.
    # Large inputs are NEVER copied (no wrapper-side jnp.pad on the hot path).
    if rows < 8:
        x2d = jnp.pad(x2d, ((0, 8 - rows), (0, 0)))
        t2d = jnp.pad(t2d, ((0, 8 - rows), (0, 0)))
        rows = 8

    # Lane (k) tiling: full width when small, else a 128-aligned tile kept
    # modest so the resident (8, k_tile) accumulator stays a few vregs.
    k_tile = k if k <= k_tile_max else k_tile_max
    n_k = pl.cdiv(k, k_tile)

    # Row tiling: target ~block_bytes per input block in its NATIVE dtype,
    # multiple of 8, never exceeding rows rounded down to a sublane group so
    # only the standard trailing partial block can occur.
    rt = max(8, block_bytes // (k_tile * itemsize))
    rt = max(8, (rt // 8) * 8)
    row_tile = min(rt, (rows // 8) * 8)
    n_r_blocks = pl.cdiv(rows, row_tile)

    # Chunk split across TensorCores: only worth it on 2-TC chips (v7x).
    two_tc = _two_tensorcores()
    if num_chunks is None:
        num_chunks = 2 if (two_tc and n_r_blocks >= 2) else 1
    num_chunks = max(1, min(num_chunks, n_r_blocks))
    n_r_inner = pl.cdiv(n_r_blocks, num_chunks)

    need_row_mask = (rows % row_tile != 0) or (num_chunks * n_r_inner != n_r_blocks)
    need_lane_mask = (k % k_tile != 0)

    n_groups = row_tile // 8
    unroll = max(1, min(8, n_groups))

    kernel = functools.partial(
        _masked_mse_partial_kernel,
        n_r_inner=n_r_inner, valid_rows=rows, valid_k=k,
        need_row_mask=need_row_mask, need_lane_mask=need_lane_mask,
        unroll=unroll)

    def data_index_map(ci, j, r):
        # Clamp duplicated trailing blocks (masked to zero inside the kernel).
        return (jnp.minimum(ci * n_r_inner + r, n_r_blocks - 1), j)

    data_spec = pl.BlockSpec((row_tile, k_tile), data_index_map)
    mask_spec = pl.BlockSpec((1, k_tile), lambda ci, j, r: (0, j))
    out_spec = pl.BlockSpec((1, 8, k_tile), lambda ci, j, r: (ci, 0, 0))

    # Chunk axis: CORE_PARALLEL actually shards the grid across v7x's two
    # TensorCores; plain "parallel" elsewhere (near-identical codegen on 1 TC).
    if (two_tc and num_chunks >= 2
            and hasattr(pltpu, "CORE_PARALLEL") and hasattr(pltpu, "ARBITRARY")):
        semantics = (pltpu.CORE_PARALLEL, pltpu.ARBITRARY, pltpu.ARBITRARY)
    else:
        semantics = ("parallel", "arbitrary", "arbitrary")

    # VMEM budget: 2 inputs x 2 pipeline buffers + resident out + mask, with
    # headroom; clamped to stay comfortably under v7x's 64 MiB physical VMEM.
    vmem_needed = (2 * 2 * row_tile * k_tile * itemsize
                   + 2 * 8 * k_tile * 4 + 2 * k_tile * 4)
    vmem_limit = int(min(48 * 1024 * 1024,
                         max(32 * 1024 * 1024, int(vmem_needed * 1.5))))

    cost = pl.CostEstimate(
        flops=int(4 * total),
        transcendentals=0,
        bytes_accessed=int(2 * rows * k * itemsize + k * 4
                           + num_chunks * 8 * k_tile * 4))

    partials = pl.pallas_call(
        kernel,
        out_shape=jax.ShapeDtypeStruct((num_chunks, 8, k_tile), jnp.float32),
        grid_spec=pltpu.PrefetchScalarGridSpec(
            num_scalar_prefetch=0,
            grid=(num_chunks, n_k, n_r_inner),
            in_specs=[data_spec, data_spec, mask_spec],
            out_specs=out_spec,
        ),
        compiler_params=pltpu.CompilerParams(
            dimension_semantics=semantics,
            vmem_limit_bytes=vmem_limit,
        ),
        cost_estimate=cost,
    )(x2d, t2d, m2d)

    # Final tiny reduction of the per-chunk (8, k_tile) partial sums.
    return jnp.sum(partials) * (1.0 / float(total))


if __name__ == "__main__":
    key = jax.random.PRNGKey(0)
    keys = jax.random.split(key, 12)

    # Case 1: small NCHW consistent with the module (batch=2, channels=4, 16x16).
    N, C, H, W = 2, 4, 16, 16
    x = jax.random.normal(keys[0], (N, C, H, W), dtype=jnp.float32)
    t = jax.random.normal(keys[1], (N, C, H, W), dtype=jnp.float32)
    mask = (jax.random.uniform(keys[2], (H, W)) > 0.5).astype(jnp.float32)

    loss = jax.block_until_ready(masked_loss_multiplicative(x, t, mask))
    ref = jnp.mean((x * mask - t * mask) ** 2)
    assert jnp.allclose(loss, ref, rtol=1e-5, atol=1e-6), (loss, ref)

    # Case 2: awkward shapes + tiny forced tiles to exercise the row-tail and
    # lane-tail masked paths and the 2-chunk path (no wrapper-side padding).
    N2, C2, H2, W2 = 2, 9, 10, 33
    x2 = jax.random.normal(keys[3], (N2, C2, H2, W2), dtype=jnp.float32)
    t2 = jax.random.normal(keys[4], (N2, C2, H2, W2), dtype=jnp.float32)
    mask2 = (jax.random.uniform(keys[5], (H2, W2)) > 0.5).astype(jnp.float32)

    loss2 = jax.block_until_ready(masked_loss_multiplicative(
        x2, t2, mask2, block_bytes=8192, k_tile_max=128, num_chunks=2))
    ref2 = jnp.mean((x2 * mask2 - t2 * mask2) ** 2)
    assert jnp.allclose(loss2, ref2, rtol=1e-5, atol=1e-6), (loss2, ref2)

    # Case 3: odd number of row blocks with a forced 2-chunk split to exercise
    # the clamped/duplicated-block masking path.
    N3, C3, H3, W3 = 5, 8, 4, 32
    x3 = jax.random.normal(keys[6], (N3, C3, H3, W3), dtype=jnp.float32)
    t3 = jax.random.normal(keys[7], (N3, C3, H3, W3), dtype=jnp.float32)
    mask3 = (jax.random.uniform(keys[8], (H3, W3)) > 0.5).astype(jnp.float32)

    loss3 = jax.block_until_ready(masked_loss_multiplicative(
        x3, t3, mask3, block_bytes=8192, k_tile_max=128, num_chunks=2))
    ref3 = jnp.mean((x3 * mask3 - t3 * mask3) ** 2)
    assert jnp.allclose(loss3, ref3, rtol=1e-5, atol=1e-6), (loss3, ref3)

    # Case 4: fewer than 8 rows (tiny-input corner case) with a scalar mask.
    N4, C4, H4, W4 = 1, 5, 8, 16
    x4 = jax.random.normal(keys[9], (N4, C4, H4, W4), dtype=jnp.float32)
    t4 = jax.random.normal(keys[10], (N4, C4, H4, W4), dtype=jnp.float32)
    mask4 = jnp.float32(1.0)

    loss4 = jax.block_until_ready(masked_loss_multiplicative(x4, t4, mask4))
    ref4 = jnp.mean((x4 * mask4 - t4 * mask4) ** 2)
    assert jnp.allclose(loss4, ref4, rtol=1e-5, atol=1e-6), (loss4, ref4)

    print("KERNEL_OK")
</pallas_src>

<mosaic_0001>
module attributes {stable_mosaic.version = 11 : i64} {
  func.func @_masked_mse_partial_kernel(%arg0: i32, %arg1: i32, %arg2: i32, %arg3: memref<8x256xf32, #tpu.memory_space<vmem>>, %arg4: memref<8x256xf32, #tpu.memory_space<vmem>>, %arg5: memref<1x256xf32, #tpu.memory_space<vmem>>, %arg6: memref<1x8x256xf32, #tpu.memory_space<vmem>>) attributes {dimension_semantics = [#tpu.dimension_semantics<parallel>, #tpu.dimension_semantics<arbitrary>, #tpu.dimension_semantics<arbitrary>], iteration_bounds = array<i64: 1, 1, 1>, scalar_prefetch = 0 : i64, scratch_operands = 0 : i64, tpu.core_type = #tpu.core_type<tc>, window_params = [{transform_indices = @transform_0, window_bounds = array<i64: 8, 256>}, {transform_indices = @transform_1, window_bounds = array<i64: 8, 256>}, {transform_indices = @transform_2, window_bounds = array<i64: 1, 256>}, {transform_indices = @transform_3, window_bounds = array<i64: 1, 8, 256>}]} {
    %c0_i32 = arith.constant 0 : i32
    %0 = arith.cmpi eq, %arg1, %c0_i32 : i32
    %c0_i32_0 = arith.constant 0 : i32
    %1 = arith.cmpi eq, %arg2, %c0_i32_0 : i32
    %2 = arith.andi %0, %1 : i1
    %3 = arith.extui %2 : i1 to i32
    %c0_i32_1 = arith.constant 0 : i32
    %4 = arith.cmpi ne, %3, %c0_i32_1 : i32
    scf.if %4 {
      %cst_12 = arith.constant 0.000000e+00 : f32
      %23 = vector.broadcast %cst_12 : f32 to vector<1x8x256xf32>
      %c0_13 = arith.constant 0 : index
      %c0_14 = arith.constant 0 : index
      %c0_15 = arith.constant 0 : index
      %24 = vector.load %arg6[%c0_13, %c0_14, %c0_15] : memref<1x8x256xf32, #tpu.memory_space<vmem>>, vector<1x8x256xf32>
      tpu.vector_store %arg6[%c0_13, %c0_14, %c0_15], %23 {strides = array<i32>} : memref<1x8x256xf32, #tpu.memory_space<vmem>>, vector<1x8x256xf32>,
    } else {
    }
    %c0 = arith.constant 0 : index
    %c0_2 = arith.constant 0 : index
    %5 = vector.load %arg5[%c0, %c0_2] : memref<1x256xf32, #tpu.memory_space<vmem>>, vector<1x256xf32>
    %6 = vector.shape_cast %5 : vector<1x256xf32> to vector<1x256xf32>
    %7 = vector.broadcast %6 : vector<1x256xf32> to vector<8x256xf32>
    %cst = arith.constant 0.000000e+00 : f32
    %8 = vector.broadcast %cst : f32 to vector<8x256xf32>
    %c0_i32_3 = arith.constant 0 : i32
    %c8_i32 = arith.constant 8 : i32
    %9 = arith.muli %c0_i32_3, %c8_i32 : i32
    %10 = tpu.assume_multiple %9, 8 : i32
    %11 = arith.index_cast %10 : i32 to index
    %c0_4 = arith.constant 0 : index
    %12 = vector.load %arg3[%11, %c0_4] : memref<8x256xf32, #tpu.memory_space<vmem>>, vector<8x256xf32>
    %13 = arith.index_cast %10 : i32 to index
    %c0_5 = arith.constant 0 : index
    %14 = vector.load %arg4[%13, %c0_5] : memref<8x256xf32, #tpu.memory_space<vmem>>, vector<8x256xf32>
    %15 = arith.subf %12, %14 : vector<8x256xf32>
    %16 = arith.mulf %15, %7 : vector<8x256xf32>
    %17 = arith.mulf %16, %16 : vector<8x256xf32>
    %18 = arith.addf %8, %17 : vector<8x256xf32>
    %c1_i32 = arith.constant 1 : i32
    %c0_6 = arith.constant 0 : index
    %c0_7 = arith.constant 0 : index
    %c0_8 = arith.constant 0 : index
    %19 = vector.load %arg6[%c0_6, %c0_7, %c0_8] : memref<1x8x256xf32, #tpu.memory_space<vmem>>, vector<1x8x256xf32>
    %20 = vector.shape_cast %18 : vector<8x256xf32> to vector<1x8x256xf32>
    %21 = arith.addf %19, %20 : vector<1x8x256xf32>
    %c0_9 = arith.constant 0 : index
    %c0_10 = arith.constant 0 : index
    %c0_11 = arith.constant 0 : index
    %22 = vector.load %arg6[%c0_9, %c0_10, %c0_11] : memref<1x8x256xf32, #tpu.memory_space<vmem>>, vector<1x8x256xf32>
    tpu.vector_store %arg6[%c0_9, %c0_10, %c0_11], %21 {strides = array<i32>} : memref<1x8x256xf32, #tpu.memory_space<vmem>>, vector<1x8x256xf32>,
    return
  }
  func.func @transform_0(%arg0: i32, %arg1: i32, %arg2: i32) -> (i32, i32) {
    %c1_i32 = arith.constant 1 : i32
    %0 = arith.muli %arg0, %c1_i32 : i32
    %1 = arith.addi %0, %arg2 : i32
    %c0_i32 = arith.constant 0 : i32
    %2 = arith.minsi %1, %c0_i32 : i32
    %c0_i32_0 = arith.constant 0 : i32
    return %2, %arg1 : i32, i32
  }
  func.func @transform_1(%arg0: i32, %arg1: i32, %arg2: i32) -> (i32, i32) {
    %c1_i32 = arith.constant 1 : i32
    %0 = arith.muli %arg0, %c1_i32 : i32
    %1 = arith.addi %0, %arg2 : i32
    %c0_i32 = arith.constant 0 : i32
    %2 = arith.minsi %1, %c0_i32 : i32
    %c0_i32_0 = arith.constant 0 : i32
    return %2, %arg1 : i32, i32
  }
  func.func @transform_2(%arg0: i32, %arg1: i32, %arg2: i32) -> (i32, i32) {
    %c0_i32 = arith.constant 0 : i32
    %c0_i32_0 = arith.constant 0 : i32
    return %c0_i32, %arg1 : i32, i32
  }
  func.func @transform_3(%arg0: i32, %arg1: i32, %arg2: i32) -> (i32, i32, i32) {
    %c0_i32 = arith.constant 0 : i32
    %c0_i32_0 = arith.constant 0 : i32
    %c0_i32_1 = arith.constant 0 : i32
    return %arg0, %c0_i32, %c0_i32_0 : i32, i32, i32
  }
}

</mosaic_0001>

<llo_original>
// kernel: tpu_custom_call.1
$region0: #{tpu_custom_call.1}
  #allocation0 [shape = 'u32[]', space=smem, size = 0x4, offset = 0x4, fixed_abs, tag = 'smem constant byte address 0x4 - core index']
  #allocation1 [shape = 'u32[72,128]{1,0:T(1,128)}', space=vmem, size = 0x9000, scoped, tag = 'internal scratch']
  %s0 = inlined_call_operand.hbm [shape: f32[8,256], index: 0, kind: input, shape index: {}]
  %s1 = inlined_call_operand.hbm [shape: f32[8,256], index: 1, kind: input, shape index: {}]
  %s2 = inlined_call_operand.hbm [shape: f32[1,256], index: 2, kind: input, shape index: {}]
  %s3 = inlined_call_operand.hbm [shape: f32[1,8,256], index: 3, kind: output, shape index: {}]
  %s4 = sld [smem:[#allocation0]]
  $region38: #{tpu_custom_call.1} parent=0
    _
  %s6 = ssub.s32 1, %s4
  %s7 = scalar_select 0, %s6, %s4
  $region1: #{tpu_custom_call.1} parent=0
    #allocation2 [shape = 'u8[8192]{0}', space=vmem, size = 0x2000, scoped, tag = 'input window, operand 0, single buffered']
    #allocation3 [shape = 's32[1]{0}', space=sflag, size = 0x4, scoped, tag = 'scoped memory for tpu_custom_call.1']
    #allocation4 [shape = 's32[1]{0}', space=sflag, size = 0x4, scoped, tag = 'scoped memory for tpu_custom_call.1']
    #allocation5 [shape = 'u8[8192]{0}', space=vmem, size = 0x2000, scoped, tag = 'input window, operand 1, single buffered']
    #allocation6 [shape = 's32[1]{0}', space=sflag, size = 0x4, scoped, tag = 'scoped memory for tpu_custom_call.1']
    #allocation7 [shape = 'u8[1024]{0}', space=vmem, size = 0x400, scoped, tag = 'input window, operand 2, single buffered']
    #allocation8 [shape = 'u8[8192]{0}', space=vmem, size = 0x2000, scoped, tag = 'output window, operand 0, single buffered']
    %8 = vsyncpa [#allocation3], 0
    %9 = vsyncpa [#allocation6], 0
    %10 = vsyncpa [#allocation4], 0
    // Predicated region
    $region2: #{tpu_custom_call.1} parent=1 // pred_check
      _
    $region3: #{tpu_custom_call.1} parent=1 // pred_check_branch
      %12 = sbr.rel (0) target = $region5
    $region4: #{tpu_custom_call.1} parent=1 // pred_region
      %s13 = sadd.s32 0, 0
      %p14 = scmp.lt.s32.totalorder %s13, 0
      %s15 = scalar_select %p14, %s13, 0
      %17 = vsyncadd [#allocation3], 0
      %s18 = smul.addr %s15, 2
      %s19 = smul.addr %s18, 8
      %s20 = scalar_lea.hbm %s0, %s19
      %s22 = sshll.u32 %s20, 4
      %s23 = int_to_ptr.hbm [resolvable:$true] %s22
      %s24 = sshll.u32 [#allocation2], 4
      %s25 = int_to_ptr.vmem [resolvable:$true] %s24
      %27 = dma.hbm_to_vmem [thread:$0]  %s23, 256, %s25, [#allocation3]
    $region5: #{tpu_custom_call.1} parent=1 // pred_fallthru
      _
    // Predicated region
    $region6: #{tpu_custom_call.1} parent=1 // pred_check
      _
    $region7: #{tpu_custom_call.1} parent=1 // pred_check_branch
      %29 = sbr.rel (0) target = $region9
    $region8: #{tpu_custom_call.1} parent=1 // pred_region
      %s30 = sadd.s32 0, 0
      %p31 = scmp.lt.s32.totalorder %s30, 0
      %s32 = scalar_select %p31, %s30, 0
      %34 = vsyncadd [#allocation6], 0
      %s35 = smul.addr %s32, 2
      %s36 = smul.addr %s35, 8
      %s37 = scalar_lea.hbm %s1, %s36
      %s39 = sshll.u32 %s37, 4
      %s40 = int_to_ptr.hbm [resolvable:$true] %s39
      %s41 = sshll.u32 [#allocation5], 4
      %s42 = int_to_ptr.vmem [resolvable:$true] %s41
      %44 = dma.hbm_to_vmem [thread:$0]  %s40, 256, %s42, [#allocation6]
    $region9: #{tpu_custom_call.1} parent=1 // pred_fallthru
      _
    // Predicated region
    $region10: #{tpu_custom_call.1} parent=1 // pred_check
      _
    $region11: #{tpu_custom_call.1} parent=1 // pred_check_branch
      %46 = sbr.rel (0) target = $region13
    $region12: #{tpu_custom_call.1} parent=1 // pred_region
      %48 = vsyncadd [#allocation6], 0
      %s50 = sshll.u32 %s2, 4
      %s51 = int_to_ptr.hbm [resolvable:$true] %s50
      %s52 = sshll.u32 [#allocation7], 4
      %s53 = int_to_ptr.vmem [resolvable:$true] %s52
      %55 = dma.hbm_to_vmem [thread:$0]  %s51, 32, %s53, [#allocation6]
    $region13: #{tpu_custom_call.1} parent=1 // pred_fallthru
      _
    // Predicated region
    $region14: #{tpu_custom_call.1} parent=1 // pred_check
      _
    $region15: #{tpu_custom_call.1} parent=1 // pred_check_branch
      %57 = sbr.rel (0) target = $region17
    $region16: #{tpu_custom_call.1} parent=1 // pred_region
      %59 = dma.done [#allocation3], 256
    $region17: #{tpu_custom_call.1} parent=1 // pred_fallthru
      _
    // Predicated region
    $region18: #{tpu_custom_call.1} parent=1 // pred_check
      _
    $region19: #{tpu_custom_call.1} parent=1 // pred_check_branch
      %61 = sbr.rel (0) target = $region21
    $region20: #{tpu_custom_call.1} parent=1 // pred_region
      %63 = dma.done [#allocation6], 256
    $region21: #{tpu_custom_call.1} parent=1 // pred_fallthru
      _
    // Predicated region
    $region22: #{tpu_custom_call.1} parent=1 // pred_check
      _
    $region23: #{tpu_custom_call.1} parent=1 // pred_check_branch
      %65 = sbr.rel (0) target = $region25
    $region24: #{tpu_custom_call.1} parent=1 // pred_region
      %67 = dma.done [#allocation6], 32
    $region25: #{tpu_custom_call.1} parent=1 // pred_fallthru
      _
    %s68 = sadd.s32 0, 0
    %p69 = scmp.lt.s32.totalorder %s68, 0
    %s70 = scalar_select %p69, %s68, 0
    %s71 = sadd.s32 0, 0
    %p72 = scmp.lt.s32.totalorder %s71, 0
    %s73 = scalar_select %p72, %s71, 0
    %p74 = scmp.eq.s32.totalorder 0, 0
    %p75 = scmp.eq.s32.totalorder 0, 0
    %p76 = pnand %p74, %p75
    %p77 = pneg %p76
    // Predicated region
    $region26: #{tpu_custom_call.1} parent=1 // pred_check
      _
    $region27: #{tpu_custom_call.1} parent=1 // pred_check_branch
      %79 = sbr.rel (%p76) target = $region29
    $region28: #{tpu_custom_call.1} parent=1 // pred_region
      %80 = vst [vmem:[#allocation8] sm:$0xff] 0.0
      %81 = vst [vmem:[#allocation8 + $0x8] sm:$0xff] 0.0
    $region29: #{tpu_custom_call.1} parent=1 // pred_fallthru
      _
    %v82 = vld [vmem:[#allocation7] sm:$0x3]
    %v84 = vperm.slane %v82, 0
    %v85 = vperm.slane %v82, 1
    %s88 = smul.u32 0, 2
    %s89 = smul.addr %s88, 8
    %s90 = scalar_lea.vmem [#allocation2], %s89
    %v91 = vld [vmem:[%s90] sm:$0xff]
    %v92 = vld [vmem:[%s90 + $0x8] sm:$0xff]
    %s93 = smul.addr %s88, 8
    %s94 = scalar_lea.vmem [#allocation5], %s93
    %v95 = vld [vmem:[%s94] sm:$0xff]
    %v96 = vld [vmem:[%s94 + $0x8] sm:$0xff]
    %v97 = vsub.f32 %v91, %v95
    %v98 = vsub.f32 %v92, %v96
    %v99 = vmul.f32 %v97, %v84
    %v100 = vmul.f32 %v98, %v85
    %v101 = vmul.f32 %v99, %v99
    %v102 = vmul.f32 %v100, %v100
    %v103 = vadd.f32 %v101, 0.0
    %v104 = vadd.f32 %v102, 0.0
    %v105 = vld [vmem:[#allocation8] sm:$0xff]
    %v106 = vld [vmem:[#allocation8 + $0x8] sm:$0xff]
    %v107 = vadd.f32 %v105, %v103
    %v108 = vadd.f32 %v106, %v104
    %109 = vst [vmem:[#allocation8] sm:$0xff] %v107
    %110 = vst [vmem:[#allocation8 + $0x8] sm:$0xff] %v108
    // Predicated region
    $region30: #{tpu_custom_call.1} parent=1 // pred_check
      _
    $region31: #{tpu_custom_call.1} parent=1 // pred_check_branch
      %112 = sbr.rel (0) target = $region33
    $region32: #{tpu_custom_call.1} parent=1 // pred_region
      %114 = vsyncadd [#allocation4], 0
      %s116 = sshll.u32 [#allocation8], 4
      %s117 = int_to_ptr.vmem [resolvable:$true] %s116
      %s118 = sshll.u32 %s3, 4
      %s119 = int_to_ptr.hbm [resolvable:$true] %s118
      %121 = dma.vmem_to_hbm [thread:$0]  %s117, 256, %s119, [#allocation4]
    $region33: #{tpu_custom_call.1} parent=1 // pred_fallthru
      _
    // Predicated region
    $region34: #{tpu_custom_call.1} parent=1 // pred_check
      _
    $region35: #{tpu_custom_call.1} parent=1 // pred_check_branch
      %123 = sbr.rel (0) target = $region37
    $region36: #{tpu_custom_call.1} parent=1 // pred_region
      %125 = dma.done [#allocation4], 256
    $region37: #{tpu_custom_call.1} parent=1 // pred_fallthru
      _
    %126 = vsyncpa [#allocation3], 1
    %127 = vsyncpa [#allocation6], 1
    %128 = vsyncpa [#allocation4], 1

</llo_original>
